<compile_context>
chip_gen: v5e
topology: v5e:2x2
jax: 0.10.0
libtpu: 0.0.40
codegen_flags: <defaults>
</compile_context>

<pallas_src>
import functools

import jax
import jax.numpy as jnp
from jax.experimental import pallas as pl
from jax.experimental.pallas import tpu as pltpu


# ---------------------------------------------------------------------------
# Kernels (rank-agnostic: work for (Bt, S, D) and (Bt, S*D) blocks)
# ---------------------------------------------------------------------------
def _add_kernel(x_ref, pos_ref, o_ref):
    # pos_ref has a leading dim of 1 -> broadcasts over the batch tile.
    o_ref[...] = (x_ref[...] + pos_ref[...]).astype(o_ref.dtype)


def _add_dropout_kernel(x_ref, pos_ref, bits_ref, o_ref, *, threshold, scale):
    s = x_ref[...] + pos_ref[...]
    # Integer-domain Bernoulli: P(bits < threshold) ~= rate  => drop.
    keep = bits_ref[...] >= jnp.uint32(threshold)
    o_ref[...] = (jnp.where(keep, s, jnp.zeros_like(s)) * scale).astype(o_ref.dtype)


# ---------------------------------------------------------------------------
# Tile-size selection
# ---------------------------------------------------------------------------
def _choose_batch_tile(B, row_bytes, n_row_bufs, budget_bytes, flattened):
    """Largest batch tile whose double-buffered working set fits the budget."""
    max_rows = max(1, (budget_bytes - 2 * row_bytes) // (n_row_bufs * row_bytes))
    if B <= max_rows:
        return B                       # block first dim == full B (always legal)
    if flattened:
        # 2-D layout: second-to-last block dim must be a multiple of 8
        # (sublanes) unless it equals the full array dim.
        bt = max(8, (max_rows // 8) * 8)
        return min(bt, B)
    # 3-D layout: last two block dims are full (S, D), so Bt is unconstrained.
    return int(max_rows)


# ---------------------------------------------------------------------------
# Wrapper
# ---------------------------------------------------------------------------
def position_embs(x, pos_embedding, *, dropout_rate=0.1, training=False,
                  key=None, vmem_budget_bytes=12 * 1024 * 1024, donate_x=False):
    """x: (B, S, D); pos_embedding: (1, S, D). Returns (B, S, D) in x.dtype."""
    B, S, D = x.shape
    assert pos_embedding.shape == (1, S, D)

    use_dropout = bool(training) and dropout_rate > 0.0
    if use_dropout and key is None:
        key = jax.random.PRNGKey(0)

    # Lane-dense layout for narrow D: flatten tokens*emb into the last axis.
    flattened = (D % 128) != 0
    if flattened:
        x2 = x.reshape(B, S * D)
        pos2 = pos_embedding.reshape(1, S * D)
        row_shape = (S * D,)
    else:
        x2 = x
        pos2 = pos_embedding
        row_shape = (S, D)

    itemsize = jnp.dtype(x.dtype).itemsize
    row_bytes = S * D * itemsize
    n_row_bufs = 6 if use_dropout else 4   # double-buffered x (+ bits) + out
    bt = _choose_batch_tile(B, row_bytes, n_row_bufs, vmem_budget_bytes, flattened)
    grid = (pl.cdiv(B, bt),)

    x_block = (bt,) + row_shape
    pos_block = (1,) + row_shape
    if flattened:
        x_map = lambda i: (i, 0)
        pos_map = lambda i: (0, 0)
    else:
        x_map = lambda i: (i, 0, 0)
        pos_map = lambda i: (0, 0, 0)

    x_spec = pl.BlockSpec(x_block, x_map)
    pos_spec = pl.BlockSpec(pos_block, pos_map)
    out_spec = pl.BlockSpec(x_block, x_map)
    out_shape = jax.ShapeDtypeStruct(x2.shape, x.dtype)
    cparams = pltpu.CompilerParams(dimension_semantics=("parallel",))
    io_alias = {0: 0} if donate_x else {}

    if not use_dropout:
        out2 = pl.pallas_call(
            _add_kernel,
            out_shape=out_shape,
            grid=grid,
            in_specs=[x_spec, pos_spec],
            out_specs=out_spec,
            compiler_params=cparams,
            input_output_aliases=io_alias,
        )(x2, pos2)
    else:
        rate = float(dropout_rate)
        threshold = min(int(round(rate * 2.0 ** 32)), 2 ** 32 - 1)
        scale = 1.0 / (1.0 - rate)
        bits = jax.random.bits(key, x2.shape, dtype=jnp.uint32)
        out2 = pl.pallas_call(
            functools.partial(_add_dropout_kernel, threshold=threshold, scale=scale),
            out_shape=out_shape,
            grid=grid,
            in_specs=[x_spec, pos_spec, x_spec],   # bits share x's tiling
            out_specs=out_spec,
            compiler_params=cparams,
            input_output_aliases=io_alias,
        )(x2, pos2, bits)

    return out2.reshape(B, S, D) if flattened else out2


# ---------------------------------------------------------------------------
# Parameter init (mirrors nn.init.trunc_normal_(pos_embedding, std=0.02))
# ---------------------------------------------------------------------------
def init_pos_embedding(key, num_patches, emb_dim):
    tn = jax.random.truncated_normal(key, -2.0, 2.0,
                                     (1, num_patches + 1, emb_dim),
                                     dtype=jnp.float32)
    return tn * 0.02


if __name__ == "__main__":
    # Small shapes consistent with the module: batch=2, num_patches=7 -> S=8,
    # emb_dim D=32.
    B, num_patches, D = 2, 7, 32
    S = num_patches + 1

    root = jax.random.PRNGKey(0)
    kx, kp, kd = jax.random.split(root, 3)
    x = jax.random.normal(kx, (B, S, D), dtype=jnp.float32)
    pos = init_pos_embedding(kp, num_patches, D)
    ref = x + pos

    # Eval mode: dropout is identity -> exact match to the broadcast add.
    out_eval = jax.block_until_ready(
        position_embs(x, pos, dropout_rate=0.1, training=False))
    assert out_eval.shape == (B, S, D)
    assert jnp.allclose(out_eval, ref, atol=1e-6, rtol=1e-6)

    # Training mode: inverted dropout. Surviving elements equal ref/(1-p).
    p = 0.1
    out_train = jax.block_until_ready(
        position_embs(x, pos, dropout_rate=p, training=True, key=kd))
    assert out_train.shape == (B, S, D)
    kept = out_train != 0.0   # random inputs -> exact zeros only from dropout
    assert jnp.allclose(jnp.where(kept, out_train, 0.0),
                        jnp.where(kept, ref / (1.0 - p), 0.0),
                        atol=1e-5, rtol=1e-5)
    keep_frac = float(jnp.mean(kept.astype(jnp.float32)))
    assert 0.6 <= keep_frac <= 1.0   # loose sanity check (512 samples, p=0.1)

    print("KERNEL_OK")
</pallas_src>

<mosaic_0001>
module attributes {stable_mosaic.version = 11 : i64} {
  func.func @_add_kernel(%arg0: i32, %arg1: memref<2x256xf32, #tpu.memory_space<vmem>>, %arg2: memref<1x256xf32, #tpu.memory_space<vmem>>, %arg3: memref<2x256xf32, #tpu.memory_space<vmem>>) attributes {dimension_semantics = [#tpu.dimension_semantics<parallel>], iteration_bounds = array<i64: 1>, scalar_prefetch = 0 : i64, scratch_operands = 0 : i64, tpu.core_type = #tpu.core_type<tc>, window_params = [{transform_indices = @transform_0, window_bounds = array<i64: 2, 256>}, {pipeline_mode = #tpu.pipeline_mode<synchronous>, transform_indices = @transform_1, window_bounds = array<i64: 1, 256>}, {transform_indices = @transform_2, window_bounds = array<i64: 2, 256>}]} {
    %c0 = arith.constant 0 : index
    %c0_0 = arith.constant 0 : index
    %0 = vector.load %arg1[%c0, %c0_0] : memref<2x256xf32, #tpu.memory_space<vmem>>, vector<2x256xf32>
    %c0_1 = arith.constant 0 : index
    %c0_2 = arith.constant 0 : index
    %1 = vector.load %arg2[%c0_1, %c0_2] : memref<1x256xf32, #tpu.memory_space<vmem>>, vector<1x256xf32>
    %2 = vector.broadcast %1 : vector<1x256xf32> to vector<2x256xf32>
    %3 = arith.addf %0, %2 : vector<2x256xf32>
    %c0_3 = arith.constant 0 : index
    %c0_4 = arith.constant 0 : index
    %4 = vector.load %arg3[%c0_3, %c0_4] : memref<2x256xf32, #tpu.memory_space<vmem>>, vector<2x256xf32>
    tpu.vector_store %arg3[%c0_3, %c0_4], %3 {strides = array<i32>} : memref<2x256xf32, #tpu.memory_space<vmem>>, vector<2x256xf32>,
    return
  }
  func.func @transform_0(%arg0: i32) -> (i32, i32) {
    %c0_i32 = arith.constant 0 : i32
    %c0_i32_0 = arith.constant 0 : i32
    return %arg0, %c0_i32 : i32, i32
  }
  func.func @transform_1(%arg0: i32) -> (i32, i32) {
    %c0_i32 = arith.constant 0 : i32
    %c0_i32_0 = arith.constant 0 : i32
    %c0_i32_1 = arith.constant 0 : i32
    return %c0_i32, %c0_i32_0 : i32, i32
  }
  func.func @transform_2(%arg0: i32) -> (i32, i32) {
    %c0_i32 = arith.constant 0 : i32
    %c0_i32_0 = arith.constant 0 : i32
    return %arg0, %c0_i32 : i32, i32
  }
}

</mosaic_0001>

<llo_original>
// kernel: tpu_custom_call.1
$region0: #{tpu_custom_call.1}
  #allocation0 [shape = 'u32[]', space=smem, size = 0x4, offset = 0x4, fixed_abs, tag = 'smem constant byte address 0x4 - core index']
  #allocation1 [shape = 'u32[72,128]{1,0:T(1,128)}', space=vmem, size = 0x9000, scoped, tag = 'internal scratch']
  %s0 = inlined_call_operand.hbm [shape: f32[2,256], index: 0, kind: input, shape index: {}]
  %s1 = inlined_call_operand.hbm [shape: f32[1,256], index: 1, kind: input, shape index: {}]
  %s2 = inlined_call_operand.hbm [shape: f32[2,256], index: 2, kind: output, shape index: {}]
  %s3 = sld [smem:[#allocation0]]
  $region26: #{tpu_custom_call.1} parent=0
    _
  %s5 = ssub.s32 1, %s3
  %s6 = scalar_select 0, %s5, %s3
  $region1: #{tpu_custom_call.1} parent=0
    #allocation2 [shape = 'u8[2048]{0}', space=vmem, size = 0x800, scoped, tag = 'input window, operand 0, single buffered']
    #allocation3 [shape = 's32[1]{0}', space=sflag, size = 0x4, scoped, tag = 'scoped memory for tpu_custom_call.1']
    #allocation4 [shape = 's32[1]{0}', space=sflag, size = 0x4, scoped, tag = 'scoped memory for tpu_custom_call.1']
    #allocation5 [shape = 'u8[1024]{0}', space=vmem, size = 0x400, scoped, tag = 'input window, operand 1, single buffered']
    #allocation6 [shape = 's32[1]{0}', space=sflag, size = 0x4, scoped, tag = 'scoped memory for tpu_custom_call.1']
    #allocation7 [shape = 'u8[2048]{0}', space=vmem, size = 0x800, scoped, tag = 'output window, operand 0, single buffered']
    %7 = vsyncpa [#allocation3], 0
    %8 = vsyncpa [#allocation6], 0
    %9 = vsyncpa [#allocation4], 0
    // Predicated region
    $region2: #{tpu_custom_call.1} parent=1 // pred_check
      _
    $region3: #{tpu_custom_call.1} parent=1 // pred_check_branch
      %11 = sbr.rel (0) target = $region5
    $region4: #{tpu_custom_call.1} parent=1 // pred_region
      %13 = vsyncadd [#allocation3], 0
      %s15 = sshll.u32 %s0, 4
      %s16 = int_to_ptr.hbm [resolvable:$true] %s15
      %s17 = sshll.u32 [#allocation2], 4
      %s18 = int_to_ptr.vmem [resolvable:$true] %s17
      %20 = dma.hbm_to_vmem [thread:$0]  %s16, 64, %s18, [#allocation3]
    $region5: #{tpu_custom_call.1} parent=1 // pred_fallthru
      _
    // Predicated region
    $region6: #{tpu_custom_call.1} parent=1 // pred_check
      _
    $region7: #{tpu_custom_call.1} parent=1 // pred_check_branch
      %22 = sbr.rel (0) target = $region9
    $region8: #{tpu_custom_call.1} parent=1 // pred_region
      %24 = vsyncadd [#allocation6], 0
      %s26 = sshll.u32 %s1, 4
      %s27 = int_to_ptr.hbm [resolvable:$true] %s26
      %s28 = sshll.u32 [#allocation5], 4
      %s29 = int_to_ptr.vmem [resolvable:$true] %s28
      %31 = dma.hbm_to_vmem [thread:$0]  %s27, 32, %s29, [#allocation6]
    $region9: #{tpu_custom_call.1} parent=1 // pred_fallthru
      _
    // Predicated region
    $region10: #{tpu_custom_call.1} parent=1 // pred_check
      _
    $region11: #{tpu_custom_call.1} parent=1 // pred_check_branch
      %33 = sbr.rel (0) target = $region13
    $region12: #{tpu_custom_call.1} parent=1 // pred_region
      %35 = dma.done [#allocation3], 64
    $region13: #{tpu_custom_call.1} parent=1 // pred_fallthru
      _
    // Predicated region
    $region14: #{tpu_custom_call.1} parent=1 // pred_check
      _
    $region15: #{tpu_custom_call.1} parent=1 // pred_check_branch
      %37 = sbr.rel (0) target = $region17
    $region16: #{tpu_custom_call.1} parent=1 // pred_region
      %39 = dma.done [#allocation6], 32
    $region17: #{tpu_custom_call.1} parent=1 // pred_fallthru
      _
    %v40 = vld [vmem:[#allocation2] sm:$0xf]
    %v41 = vld [vmem:[#allocation5] sm:$0x3]
    %v43 = vperm.slane %v41, 0
    %v44 = vperm.slane %v41, 1
    %v45 = vrot.slane %v44, 6
    %vm46 = vcmask 1041408
    %v47 = vsel %vm46, %v43, %v45
    %v49 = vadd.f32 %v40, %v47
    %50 = vst [vmem:[#allocation7] sm:$0xf] %v49
    // Predicated region
    $region18: #{tpu_custom_call.1} parent=1 // pred_check
      _
    $region19: #{tpu_custom_call.1} parent=1 // pred_check_branch
      %52 = sbr.rel (0) target = $region21
    $region20: #{tpu_custom_call.1} parent=1 // pred_region
      %54 = vsyncadd [#allocation4], 0
      %s56 = sshll.u32 [#allocation7], 4
      %s57 = int_to_ptr.vmem [resolvable:$true] %s56
      %s58 = sshll.u32 %s2, 4
      %s59 = int_to_ptr.hbm [resolvable:$true] %s58
      %61 = dma.vmem_to_hbm [thread:$0]  %s57, 64, %s59, [#allocation4]
    $region21: #{tpu_custom_call.1} parent=1 // pred_fallthru
      _
    // Predicated region
    $region22: #{tpu_custom_call.1} parent=1 // pred_check
      _
    $region23: #{tpu_custom_call.1} parent=1 // pred_check_branch
      %63 = sbr.rel (0) target = $region25
    $region24: #{tpu_custom_call.1} parent=1 // pred_region
      %65 = dma.done [#allocation4], 64
    $region25: #{tpu_custom_call.1} parent=1 // pred_fallthru
      _
    %66 = vsyncpa [#allocation3], 1
    %67 = vsyncpa [#allocation6], 1
    %68 = vsyncpa [#allocation4], 1

</llo_original>
